<compile_context>
chip_gen: v6e
topology: v6e:2x2x1
jax: 0.10.0
libtpu: 0.0.40
codegen_flags: <defaults>
</compile_context>

<pallas_src>
import jax
import jax.numpy as jnp
import numpy as np
from jax import lax
from jax.experimental import pallas as pl
from jax.experimental.pallas import tpu as pltpu


# ----------------------------- small shared helpers -----------------------------

def _chip_vmem_bytes():
    """Physical VMEM per TensorCore (generation-aware), conservative fallback = 64 MiB."""
    cap = 64 << 20
    try:
        info = pltpu.get_tpu_info()
        cap = int(getattr(info, "vmem_capacity_bytes", cap)) or cap
    except Exception:
        pass
    return cap


def _vmem_limit_bytes(estimate):
    """Scoped-VMEM request: block-size-derived estimate + headroom, capped at 85% of VMEM."""
    cap = _chip_vmem_bytes()
    return int(min(max(int(estimate) + (4 << 20), 16 << 20), int(cap * 0.85)))


def _per_step_vmem_bytes(bh, wd, ci, cm, co):
    """Worst-case per-grid-step working set over kernels B and C:
    double-buffered pipelined blocks + persistent scratch + conv accumulator temps."""
    c_big = max(ci, cm)
    return (2 * bh * wd * ci * 4          # x blocks (f32)
            + 2 * bh * wd * cm * 2        # h blocks (bf16)
            + 2 * bh * wd * co * 4        # out blocks (f32)
            + 2 * 9 * c_big * co * 2      # conv weights (bf16)
            + (bh + 2) * wd * c_big * 4   # padded norm+SiLU scratch (f32)
            + 2 * wd * c_big * 4          # halo row buffer
            + 2 * bh * wd * co * 4)       # conv accumulator temporaries


def _pick_block_h(hgt, wd, ci, cm, co, budget, max_block_h=None):
    """Largest divisor of H whose per-step working set fits the VMEM budget.
    Never falls back to an arbitrary full-image tile that could blow the budget."""
    cap = hgt if max_block_h is None else max(1, min(int(max_block_h), hgt))
    best = 1
    for bh in range(1, cap + 1):
        if hgt % bh == 0 and _per_step_vmem_bytes(bh, wd, ci, cm, co) <= budget:
            best = bh
    return best


def _norm_silu(v, scale, shift):
    """Per-channel affine (fused GroupNorm) + SiLU, in f32."""
    y = v.astype(jnp.float32) * scale + shift
    return y * jax.nn.sigmoid(y)


def _conv3x3_taps(pad_ref, w_ref, bias, th, wd, ci, co, fuse_k):
    """3x3 'same' conv over a (th+2, wd, ci) normalized f32 scratch -> (th*wd, co) f32.

    Rows 1..th of pad_ref hold the tile, rows 0 / th+1 hold halo rows (or zeros at the
    image boundary).  dx shifts are XLU sublane rolls of the flattened (th*wd, ci) slab
    plus an edge-column mask (the conv's zero padding along W).  Accumulation is kept in
    a local value (bias + dots) and returned once -- no per-dy VMEM round trips.

    fuse_k=True  : w_ref is (3, 3*ci, co); left/center/right are concatenated along the
                   lane axis -> one K=3*ci matmul per dy (3 matmuls total).
    fuse_k=False : w_ref is (9, ci, co); 9 separate K=ci matmuls (safe for C not a
                   multiple of 128, where lane-concat offsets would be unaligned).
    """
    m = th * wd
    col = lax.broadcasted_iota(jnp.int32, (m, 1), 0) % wd
    left_edge = col == 0
    right_edge = col == (wd - 1)

    acc = jnp.broadcast_to(bias.astype(jnp.float32), (m, co))
    for dy in range(3):
        slab = pad_ref[pl.ds(dy, th)].reshape(m, ci)                      # f32 (m, ci)
        # neighbour columns via XLU rolls (roll(x, s)[i] = x[i - s], like jnp.roll)
        left = jnp.where(left_edge, 0.0, pltpu.roll(slab, 1, axis=0))     # column x-1
        right = jnp.where(right_edge, 0.0, pltpu.roll(slab, m - 1, axis=0))  # column x+1
        if fuse_k:
            row = jnp.concatenate([left, slab, right], axis=-1).astype(jnp.bfloat16)
            acc = acc + jnp.dot(row, w_ref[dy], preferred_element_type=jnp.float32)
        else:
            acc = acc + jnp.dot(left.astype(jnp.bfloat16), w_ref[3 * dy + 0],
                                preferred_element_type=jnp.float32)
            acc = acc + jnp.dot(slab.astype(jnp.bfloat16), w_ref[3 * dy + 1],
                                preferred_element_type=jnp.float32)
            acc = acc + jnp.dot(right.astype(jnp.bfloat16), w_ref[3 * dy + 2],
                                preferred_element_type=jnp.float32)
    return acc


# ----------------------- kernel A: GroupNorm statistics of x --------------------

def _gn_stats_kernel(x_ref, stats_ref):
    th, wd, c = x_ref.shape[1], x_ref.shape[2], x_ref.shape[3]
    xv = x_ref[0].astype(jnp.float32).reshape(th * wd, c)
    s = jnp.sum(xv, axis=0, keepdims=True)
    ss = jnp.sum(xv * xv, axis=0, keepdims=True)
    stats_ref[...] = jnp.concatenate([s, ss], axis=0)[None, None]


def gn_stats(x, block_h):
    n, hgt, wd, c = x.shape
    n_ht = hgt // block_h
    est = 2 * block_h * wd * c * 4 + 2 * 2 * c * 4
    return pl.pallas_call(
        _gn_stats_kernel,
        out_shape=jax.ShapeDtypeStruct((n, n_ht, 2, c), jnp.float32),
        grid=(n, n_ht),
        in_specs=[pl.BlockSpec((1, block_h, wd, c), lambda i, t: (i, t, 0, 0))],
        out_specs=pl.BlockSpec((1, 1, 2, c), lambda i, t: (i, t, 0, 0)),
        compiler_params=pltpu.CompilerParams(
            dimension_semantics=("parallel", "parallel"),
            vmem_limit_bytes=_vmem_limit_bytes(est)),
    )(x)


def _gn_affine(stats, gamma, beta, groups, hw, eps=1e-5):
    """Fold GroupNorm stats + affine into per-channel (scale, shift): tiny, plain jnp."""
    n, _, c = stats.shape
    cg = c // groups
    s = stats[:, 0, :].reshape(n, groups, cg).sum(axis=-1)
    ss = stats[:, 1, :].reshape(n, groups, cg).sum(axis=-1)
    cnt = float(hw * cg)
    mean = s / cnt
    var = ss / cnt - mean * mean
    rstd = lax.rsqrt(var + eps)
    mean_c = jnp.repeat(mean, cg, axis=1)
    rstd_c = jnp.repeat(rstd, cg, axis=1)
    scale = rstd_c * gamma[None, :].astype(jnp.float32)
    shift = beta[None, :].astype(jnp.float32) - mean_c * scale
    return jnp.stack([scale, shift], axis=1)          # (n, 2, c)


# ------------- kernel B: GN1 + SiLU + conv3x3 (-> h) + GN2 partial stats ---------

def _make_gn_silu_conv_kernel(fuse_k):
    def kernel(x_ref, x_hbm, aff_ref, w_ref, b_ref,      # inputs
               h_ref, stats_ref,                         # outputs
               xpad_ref, halo_ref, sem):                 # scratch
        n, ht = pl.program_id(0), pl.program_id(1)
        n_ht = pl.num_programs(1)
        th, wd, ci = x_ref.shape[1], x_ref.shape[2], x_ref.shape[3]
        co = h_ref.shape[3]
        scale = aff_ref[0, 0:1, :]
        shift = aff_ref[0, 1:2, :]

        # Kick off halo-row DMAs first so they overlap the center-row norm+SiLU work.
        @pl.when(ht > 0)
        def _():
            pltpu.make_async_copy(x_hbm.at[n, pl.ds(ht * th - 1, 1)],
                                  halo_ref.at[pl.ds(0, 1)], sem.at[0]).start()

        @pl.when(ht < n_ht - 1)
        def _():
            pltpu.make_async_copy(x_hbm.at[n, pl.ds((ht + 1) * th, 1)],
                                  halo_ref.at[pl.ds(1, 1)], sem.at[1]).start()

        # normalized + SiLU'd center rows -> scratch rows [1, th+1)
        xpad_ref[pl.ds(1, th)] = _norm_silu(x_ref[0], scale, shift)

        # top halo row (global row ht*th - 1) or zero padding at the image boundary
        @pl.when(ht > 0)
        def _():
            pltpu.make_async_copy(x_hbm.at[n, pl.ds(ht * th - 1, 1)],
                                  halo_ref.at[pl.ds(0, 1)], sem.at[0]).wait()
            xpad_ref[pl.ds(0, 1)] = _norm_silu(halo_ref[pl.ds(0, 1)], scale, shift)

        @pl.when(ht == 0)
        def _():
            xpad_ref[pl.ds(0, 1)] = jnp.zeros((1, wd, ci), jnp.float32)

        # bottom halo row (global row (ht+1)*th) or zero padding
        @pl.when(ht < n_ht - 1)
        def _():
            pltpu.make_async_copy(x_hbm.at[n, pl.ds((ht + 1) * th, 1)],
                                  halo_ref.at[pl.ds(1, 1)], sem.at[1]).wait()
            xpad_ref[pl.ds(th + 1, 1)] = _norm_silu(halo_ref[pl.ds(1, 1)], scale, shift)

        @pl.when(ht == n_ht - 1)
        def _():
            xpad_ref[pl.ds(th + 1, 1)] = jnp.zeros((1, wd, ci), jnp.float32)

        hv = _conv3x3_taps(xpad_ref, w_ref, b_ref[...], th, wd, ci, co, fuse_k)
        hb = hv.astype(jnp.bfloat16)
        h_ref[0] = hb.reshape(th, wd, co)

        # Per-tile partial GN2 stats of the bf16-rounded h (exactly what kernel C reads).
        hq = hb.astype(jnp.float32)
        s = jnp.sum(hq, axis=0, keepdims=True)
        ss = jnp.sum(hq * hq, axis=0, keepdims=True)
        stats_ref[...] = jnp.concatenate([s, ss], axis=0)[None, None]

    return kernel


def gn_silu_conv3x3(x, affine, w, b, block_h):
    n, hgt, wd, ci = x.shape
    co = w.shape[-1]
    n_ht = hgt // block_h
    fuse_k = (ci % 128 == 0)
    wk = (w.reshape(3, 3 * ci, co) if fuse_k else w.reshape(9, ci, co)).astype(jnp.bfloat16)
    b2d = b.reshape(1, co).astype(jnp.float32)
    est = (2 * block_h * wd * ci * 4 + 2 * block_h * wd * co * 2 + 2 * wk.size * 2
           + (block_h + 2) * wd * ci * 4 + 2 * wd * ci * 4 + 2 * block_h * wd * co * 4)
    h, stats = pl.pallas_call(
        _make_gn_silu_conv_kernel(fuse_k),
        out_shape=(jax.ShapeDtypeStruct((n, hgt, wd, co), jnp.bfloat16),
                   jax.ShapeDtypeStruct((n, n_ht, 2, co), jnp.float32)),
        grid=(n, n_ht),
        in_specs=[pl.BlockSpec((1, block_h, wd, ci), lambda i, t: (i, t, 0, 0)),
                  pl.BlockSpec(memory_space=pl.ANY),              # raw HBM x for halo rows
                  pl.BlockSpec((1, 2, ci), lambda i, t: (i, 0, 0)),
                  pl.BlockSpec(wk.shape, lambda i, t: (0, 0, 0)),
                  pl.BlockSpec((1, co), lambda i, t: (0, 0))],
        out_specs=(pl.BlockSpec((1, block_h, wd, co), lambda i, t: (i, t, 0, 0)),
                   pl.BlockSpec((1, 1, 2, co), lambda i, t: (i, t, 0, 0))),
        scratch_shapes=[pltpu.VMEM((block_h + 2, wd, ci), jnp.float32),
                        pltpu.VMEM((2, wd, ci), x.dtype),
                        pltpu.SemaphoreType.DMA((2,))],
        compiler_params=pltpu.CompilerParams(
            dimension_semantics=("parallel", "parallel"),
            vmem_limit_bytes=_vmem_limit_bytes(est)),
    )(x, x, affine, wk, b2d)
    return h, stats


# -------------- kernel C: GN2 + SiLU + conv3x3 + residual (-> output) ------------

def _make_gn_silu_conv_res_kernel(has_proj, fuse_k):
    def kernel(*refs):
        if has_proj:
            (h_blk, h_hbm, aff_ref, w_ref, b_ref, x_ref, wr_ref,
             o_ref, hpad_ref, halo_ref, sem) = refs
        else:
            (h_blk, h_hbm, aff_ref, w_ref, b_ref, x_ref,
             o_ref, hpad_ref, halo_ref, sem) = refs
            wr_ref = None
        n, ht = pl.program_id(0), pl.program_id(1)
        n_ht = pl.num_programs(1)
        th, wd, cm = h_blk.shape[1], h_blk.shape[2], h_blk.shape[3]
        co = o_ref.shape[3]
        ci = x_ref.shape[3]
        scale = aff_ref[0, 0:1, :]
        shift = aff_ref[0, 1:2, :]

        # Start halo DMAs early; they overlap the center-row norm+SiLU work below.
        @pl.when(ht > 0)
        def _():
            pltpu.make_async_copy(h_hbm.at[n, pl.ds(ht * th - 1, 1)],
                                  halo_ref.at[pl.ds(0, 1)], sem.at[0]).start()

        @pl.when(ht < n_ht - 1)
        def _():
            pltpu.make_async_copy(h_hbm.at[n, pl.ds((ht + 1) * th, 1)],
                                  halo_ref.at[pl.ds(1, 1)], sem.at[1]).start()

        hpad_ref[pl.ds(1, th)] = _norm_silu(h_blk[0], scale, shift)

        @pl.when(ht > 0)
        def _():
            pltpu.make_async_copy(h_hbm.at[n, pl.ds(ht * th - 1, 1)],
                                  halo_ref.at[pl.ds(0, 1)], sem.at[0]).wait()
            hpad_ref[pl.ds(0, 1)] = _norm_silu(halo_ref[pl.ds(0, 1)], scale, shift)

        @pl.when(ht == 0)
        def _():
            hpad_ref[pl.ds(0, 1)] = jnp.zeros((1, wd, cm), jnp.float32)

        @pl.when(ht < n_ht - 1)
        def _():
            pltpu.make_async_copy(h_hbm.at[n, pl.ds((ht + 1) * th, 1)],
                                  halo_ref.at[pl.ds(1, 1)], sem.at[1]).wait()
            hpad_ref[pl.ds(th + 1, 1)] = _norm_silu(halo_ref[pl.ds(1, 1)], scale, shift)

        @pl.when(ht == n_ht - 1)
        def _():
            hpad_ref[pl.ds(th + 1, 1)] = jnp.zeros((1, wd, cm), jnp.float32)

        hv = _conv3x3_taps(hpad_ref, w_ref, b_ref[...], th, wd, cm, co, fuse_k)

        # residual folded into the epilogue (no extra HBM round trip)
        xv = x_ref[0].astype(jnp.float32).reshape(th * wd, ci)
        if has_proj:
            res = jnp.dot(xv.astype(jnp.bfloat16), wr_ref[...],
                          preferred_element_type=jnp.float32)
        else:
            res = xv
        o_ref[0] = (hv + res).reshape(th, wd, co)

    return kernel


def gn_silu_conv3x3_residual(h, affine, w, b, x, wr, br, block_h):
    n, hgt, wd, cm = h.shape
    co = w.shape[-1]
    ci = x.shape[-1]
    n_ht = hgt // block_h
    has_proj = wr is not None
    if not has_proj:
        assert ci == co, "identity residual requires matching channels"
    fuse_k = (cm % 128 == 0)
    wk = (w.reshape(3, 3 * cm, co) if fuse_k else w.reshape(9, cm, co)).astype(jnp.bfloat16)
    bias = (b + br) if has_proj else b              # fold the 1x1-conv bias into the epilogue
    b2d = bias.reshape(1, co).astype(jnp.float32)

    ins = [h, h, affine, wk, b2d, x]
    in_specs = [pl.BlockSpec((1, block_h, wd, cm), lambda i, t: (i, t, 0, 0)),
                pl.BlockSpec(memory_space=pl.ANY),               # raw HBM h for halo rows
                pl.BlockSpec((1, 2, cm), lambda i, t: (i, 0, 0)),
                pl.BlockSpec(wk.shape, lambda i, t: (0, 0, 0)),
                pl.BlockSpec((1, co), lambda i, t: (0, 0)),
                pl.BlockSpec((1, block_h, wd, ci), lambda i, t: (i, t, 0, 0))]
    if has_proj:
        ins.append(wr.astype(jnp.bfloat16))
        in_specs.append(pl.BlockSpec((ci, co), lambda i, t: (0, 0)))

    est = (2 * block_h * wd * cm * 2 + 2 * block_h * wd * ci * 4
           + 2 * block_h * wd * co * 4 + 2 * wk.size * 2 + 2 * ci * co * 2
           + (block_h + 2) * wd * cm * 4 + 2 * wd * cm * 2 + 2 * block_h * wd * co * 4)
    return pl.pallas_call(
        _make_gn_silu_conv_res_kernel(has_proj, fuse_k),
        out_shape=jax.ShapeDtypeStruct((n, hgt, wd, co), jnp.float32),
        grid=(n, n_ht),
        in_specs=in_specs,
        out_specs=pl.BlockSpec((1, block_h, wd, co), lambda i, t: (i, t, 0, 0)),
        scratch_shapes=[pltpu.VMEM((block_h + 2, wd, cm), jnp.float32),
                        pltpu.VMEM((2, wd, cm), h.dtype),
                        pltpu.SemaphoreType.DMA((2,))],
        compiler_params=pltpu.CompilerParams(
            dimension_semantics=("parallel", "parallel"),
            vmem_limit_bytes=_vmem_limit_bytes(est)),
    )(*ins)


# ---------------------------------- full module ----------------------------------

def vae_residual_block(x_nchw, params, groups=32, max_block_h=None, eps=1e-5):
    """Forward pass of VAE_ResidualBlock. Input/output are NCHW (PyTorch convention)."""
    x = jnp.transpose(x_nchw, (0, 2, 3, 1)).astype(jnp.float32)   # NCHW -> NHWC
    _, hgt, wd, ci = x.shape
    co = params['w1'].shape[-1]
    hw = hgt * wd

    # Generation-aware tiling: largest divisor of H whose working set fits ~60% of VMEM.
    budget = int(_chip_vmem_bytes() * 0.6)
    bh = _pick_block_h(hgt, wd, ci, co, co, budget, max_block_h)

    stats1 = gn_stats(x, bh).sum(axis=1)                           # (n, 2, ci)
    aff1 = _gn_affine(stats1, params['gn1_g'], params['gn1_b'], groups, hw, eps)
    h, stats2p = gn_silu_conv3x3(x, aff1, params['w1'], params['b1'], bh)
    aff2 = _gn_affine(stats2p.sum(axis=1), params['gn2_g'], params['gn2_b'], groups, hw, eps)
    out = gn_silu_conv3x3_residual(h, aff2, params['w2'], params['b2'],
                                   x, params.get('wr'), params.get('br'), bh)
    return jnp.transpose(out, (0, 3, 1, 2))                        # NHWC -> NCHW


# ------------------------------ pure-JAX reference -------------------------------

def _ref_groupnorm(x, gamma, beta, groups, eps=1e-5):
    n, hgt, wd, c = x.shape
    xg = x.reshape(n, hgt, wd, groups, c // groups)
    mean = xg.mean(axis=(1, 2, 4), keepdims=True)
    var = xg.var(axis=(1, 2, 4), keepdims=True)
    xn = ((xg - mean) / jnp.sqrt(var + eps)).reshape(n, hgt, wd, c)
    return xn * gamma + beta


def ref_vae_residual_block(x_nchw, p, groups=32):
    x = jnp.transpose(x_nchw, (0, 2, 3, 1)).astype(jnp.float32)
    h = jax.nn.silu(_ref_groupnorm(x, p['gn1_g'], p['gn1_b'], groups))
    h = lax.conv_general_dilated(h, p['w1'], (1, 1), [(1, 1), (1, 1)],
                                 dimension_numbers=('NHWC', 'HWIO', 'NHWC')) + p['b1']
    h = jax.nn.silu(_ref_groupnorm(h, p['gn2_g'], p['gn2_b'], groups))
    h = lax.conv_general_dilated(h, p['w2'], (1, 1), [(1, 1), (1, 1)],
                                 dimension_numbers=('NHWC', 'HWIO', 'NHWC')) + p['b2']
    res = (x @ p['wr'] + p['br']) if 'wr' in p else x
    return jnp.transpose(h + res, (0, 3, 1, 2))


# -------------------------------------- main -------------------------------------

if __name__ == "__main__":
    key = jax.random.PRNGKey(0)

    def make_params(k, cin, cout, proj):
        ks = jax.random.split(k, 12)
        p = dict(
            gn1_g=1.0 + 0.1 * jax.random.normal(ks[1], (cin,), jnp.float32),
            gn1_b=0.1 * jax.random.normal(ks[2], (cin,), jnp.float32),
            w1=0.1 * jax.random.normal(ks[3], (3, 3, cin, cout), jnp.float32),   # HWIO
            b1=0.1 * jax.random.normal(ks[4], (cout,), jnp.float32),
            gn2_g=1.0 + 0.1 * jax.random.normal(ks[5], (cout,), jnp.float32),
            gn2_b=0.1 * jax.random.normal(ks[6], (cout,), jnp.float32),
            w2=0.1 * jax.random.normal(ks[7], (3, 3, cout, cout), jnp.float32),  # HWIO
            b2=0.1 * jax.random.normal(ks[8], (cout,), jnp.float32),
        )
        if proj:
            p['wr'] = 0.1 * jax.random.normal(ks[9], (cin, cout), jnp.float32)
            p['br'] = 0.1 * jax.random.normal(ks[10], (cout,), jnp.float32)
        return p

    N, H, W = 2, 16, 16
    k1, k2, k3, k4, k5, k6 = jax.random.split(key, 6)

    # config 1: in != out channels -> 1x1 projection residual; H tiled (async halo DMA path)
    x1 = jax.random.normal(k1, (N, 32, H, W), jnp.float32)
    p1 = make_params(k2, 32, 64, proj=True)
    out1 = jax.block_until_ready(vae_residual_block(x1, p1, max_block_h=8))
    assert out1.shape == (N, 64, H, W), out1.shape
    ref1 = jax.block_until_ready(ref_vae_residual_block(x1, p1))
    np.testing.assert_allclose(np.asarray(out1), np.asarray(ref1), rtol=3e-2, atol=5e-2)

    # config 2: in == out channels -> identity residual; auto block_h (single H-tile here)
    x2 = jax.random.normal(k3, (N, 64, H, W), jnp.float32)
    p2 = make_params(k4, 64, 64, proj=False)
    out2 = jax.block_until_ready(vae_residual_block(x2, p2))
    assert out2.shape == (N, 64, H, W), out2.shape
    ref2 = jax.block_until_ready(ref_vae_residual_block(x2, p2))
    np.testing.assert_allclose(np.asarray(out2), np.asarray(ref2), rtol=3e-2, atol=5e-2)

    # config 3: 128 channels -> fused-K (K = 3*C) MXU path; identity residual; halo path
    x3 = jax.random.normal(k5, (1, 128, H, W), jnp.float32)
    p3 = make_params(k6, 128, 128, proj=False)
    out3 = jax.block_until_ready(vae_residual_block(x3, p3, max_block_h=8))
    assert out3.shape == (1, 128, H, W), out3.shape
    ref3 = jax.block_until_ready(ref_vae_residual_block(x3, p3))
    np.testing.assert_allclose(np.asarray(out3), np.asarray(ref3), rtol=3e-2, atol=5e-2)

    print("KERNEL_OK")
</pallas_src>

<mosaic_0001>
module attributes {stable_mosaic.version = 11 : i64} {
  func.func @_gn_stats_kernel(%arg0: i32, %arg1: i32, %arg2: memref<1x8x16x32xf32, #tpu.memory_space<vmem>>, %arg3: memref<1x1x2x32xf32, #tpu.memory_space<vmem>>) attributes {dimension_semantics = [#tpu.dimension_semantics<parallel>, #tpu.dimension_semantics<parallel>], iteration_bounds = array<i64: 2, 2>, scalar_prefetch = 0 : i64, scratch_operands = 0 : i64, tpu.core_type = #tpu.core_type<tc>, window_params = [{transform_indices = @transform_0, window_bounds = array<i64: 1, 8, 16, 32>}, {transform_indices = @transform_1, window_bounds = array<i64: 1, 1, 2, 32>}]} {
    %c0 = arith.constant 0 : index
    %c0_0 = arith.constant 0 : index
    %c0_1 = arith.constant 0 : index
    %c0_2 = arith.constant 0 : index
    %0 = vector.load %arg2[%c0, %c0_0, %c0_1, %c0_2] : memref<1x8x16x32xf32, #tpu.memory_space<vmem>>, vector<1x8x16x32xf32>
    %1 = vector.shape_cast %0 : vector<1x8x16x32xf32> to vector<8x16x32xf32>
    %2 = vector.shape_cast %1 : vector<8x16x32xf32> to vector<128x32xf32>
    %cst = arith.constant dense<0.000000e+00> : vector<32xf32>
    %3 = vector.multi_reduction <add>, %2, %cst [0] : vector<128x32xf32> to vector<32xf32>
    %4 = vector.shape_cast %3 : vector<32xf32> to vector<1x32xf32>
    %5 = arith.mulf %2, %2 : vector<128x32xf32>
    %cst_3 = arith.constant dense<0.000000e+00> : vector<32xf32>
    %6 = vector.multi_reduction <add>, %5, %cst_3 [0] : vector<128x32xf32> to vector<32xf32>
    %7 = vector.shape_cast %6 : vector<32xf32> to vector<1x32xf32>
    %8 = tpu.concatenate %4, %7 in 0 : vector<1x32xf32>, vector<1x32xf32> -> vector<2x32xf32>
    %9 = vector.shape_cast %8 : vector<2x32xf32> to vector<1x1x2x32xf32>
    %c0_4 = arith.constant 0 : index
    %c0_5 = arith.constant 0 : index
    %c0_6 = arith.constant 0 : index
    %c0_7 = arith.constant 0 : index
    %10 = vector.load %arg3[%c0_4, %c0_5, %c0_6, %c0_7] : memref<1x1x2x32xf32, #tpu.memory_space<vmem>>, vector<1x1x2x32xf32>
    tpu.vector_store %arg3[%c0_4, %c0_5, %c0_6, %c0_7], %9 {strides = array<i32>} : memref<1x1x2x32xf32, #tpu.memory_space<vmem>>, vector<1x1x2x32xf32>,
    return
  }
  func.func @transform_0(%arg0: i32, %arg1: i32) -> (i32, i32, i32, i32) {
    %c0_i32 = arith.constant 0 : i32
    %c0_i32_0 = arith.constant 0 : i32
    %c0_i32_1 = arith.constant 0 : i32
    return %arg0, %arg1, %c0_i32, %c0_i32_0 : i32, i32, i32, i32
  }
  func.func @transform_1(%arg0: i32, %arg1: i32) -> (i32, i32, i32, i32) {
    %c0_i32 = arith.constant 0 : i32
    %c0_i32_0 = arith.constant 0 : i32
    %c0_i32_1 = arith.constant 0 : i32
    return %arg0, %arg1, %c0_i32, %c0_i32_0 : i32, i32, i32, i32
  }
}

</mosaic_0001>

<llo_original>
// kernel: tpu_custom_call.1
$region0: #{tpu_custom_call.1}
  #allocation0 [shape = 'u32[]', space=smem, size = 0x4, offset = 0x4, fixed_abs, tag = 'smem constant byte address 0x4 - core index']
  #allocation1 [shape = 'u32[144,128]{1,0:T(1,128)}', space=vmem, size = 0x12000, scoped, tag = 'internal scratch']
  %s0 = inlined_call_operand.hbm [shape: f32[2,16,16,32], index: 0, kind: input, shape index: {}]
  %s1 = inlined_call_operand.hbm [shape: f32[2,2,2,32], index: 1, kind: output, shape index: {}]
  %s2 = sld [smem:[#allocation0]]
  $region41: #{tpu_custom_call.1} parent=0
    _
  %s4 = ssub.s32 1, %s2
  %s5 = scalar_select 0, %s4, %s2
  $region1: #{tpu_custom_call.1} parent=0
    #allocation2 [shape = 'u8[131072]{0}', space=vmem, size = 0x20000, scoped, tag = 'input window, operand 0']
    #allocation3 [shape = 's32[2]{0}', space=sflag, size = 0x8, scoped, tag = 'scoped memory for tpu_custom_call.1']
    #allocation4 [shape = 's32[2]{0}', space=sflag, size = 0x8, scoped, tag = 'scoped memory for tpu_custom_call.1']
    #allocation5 [shape = 'u8[2048]{0}', space=vmem, size = 0x800, scoped, tag = 'output window, operand 0']
    %6 = vsyncpa [#allocation3], 0
    %s7 = scalar_lea.sflag [#allocation3], 1
    %8 = vsyncpa %s7, 0
    %9 = vsyncpa [#allocation4], 0
    %s10 = scalar_lea.sflag [#allocation4], 1
    %11 = vsyncpa %s10, 0
    loop: start=0, step=1, limit=6
    $region2: #{tpu_custom_call.1} parent=1 // loop_pre_header
      _
    $region3: #{tpu_custom_call.1} parent=1 // loop_header
      %s13 = sphi 0, %s17
      %p14 = scmp.ge.s32.totalorder %s13, 6
      %s20 = sphi 0, %s32
      %s21 = sphi 0, %s28
      %s22 = sphi 0, %s20
      %s23 = sphi 0, %s21
      %s24 = sphi 0, %s22
      %s25 = sphi 0, %s23
      %s37 = sphi 0, %s39
      %s40 = sphi 0, %s37
      %s41 = sphi 0, %s40
      %s57 = sphi 0, %s41
      %s65 = sphi 0, %s67
      %s68 = sphi 0, %s65
      %s69 = sphi 0, %s68
      %s85 = sphi 0, %s69
    $region4: #{tpu_custom_call.1} parent=1 // loop_header_branch
      %16 = sbr.rel (%p14) target = $region8
    $region5: #{tpu_custom_call.1} parent=1 // loop_body
      %s18 = ssub.s32 %s13, 1
      %s19 = ssub.s32 %s13, 2
      %s26 = sadd.s32 1, %s21
      %p27 = scmp.ge.s32.totalorder %s26, 2
      %s28 = scalar_select %p27, 0, %s26
      %s29 = sadd.s32 1, %s20
      %s30 = scalar_select %p27, %s29, %s20
      %p31 = scmp.ge.s32.totalorder %s30, 2
      %s32 = scalar_select %p31, 0, %s30
      %s33 = ssub.s32 %s20, %s32
      %s34 = ssub.s32 %s21, %s28
      %s35 = sor.u32 %s33, %s34
      %p36 = scmp.eq.s32.totalorder %s35, 0
      %s38 = sadd.s32 %s37, 1
      %s39 = scalar_select %p36, %s37, %s38
      %p42 = pneg %p36
      %p43 = scmp.eq.s32.totalorder %s13, 3
      %p44 = por %p42, %p43
      %p45 = scmp.ne.s32.totalorder %s37, %s40
      %p46 = scmp.eq.s32.totalorder %s13, 0
      %p47 = por %p45, %p46
      %p48 = scmp.ne.s32.totalorder %s37, %s40
      %p49 = scmp.eq.s32.totalorder %s18, 3
      %p50 = por %p48, %p49
      %p51 = scmp.ne.s32.totalorder %s40, %s41
      %p52 = scmp.eq.s32.totalorder %s18, 0
      %p53 = por %p51, %p52
      %p54 = scmp.ne.s32.totalorder %s40, %s41
      %p55 = scmp.eq.s32.totalorder %s19, 3
      %p56 = por %p54, %p55
      %p58 = scmp.ne.s32.totalorder %s41, %s57
      %p59 = scmp.eq.s32.totalorder %s19, 0
      %p60 = por %p58, %p59
      %s61 = ssub.s32 %s20, %s32
      %s62 = ssub.s32 %s21, %s28
      %s63 = sor.u32 %s61, %s62
      %p64 = scmp.eq.s32.totalorder %s63, 0
      %s66 = sadd.s32 %s65, 1
      %s67 = scalar_select %p64, %s65, %s66
      %p70 = pneg %p64
      %p71 = scmp.eq.s32.totalorder %s13, 3
      %p72 = por %p70, %p71
      %p73 = scmp.ne.s32.totalorder %s65, %s68
      %p74 = scmp.eq.s32.totalorder %s13, 0
      %p75 = por %p73, %p74
      %p76 = scmp.ne.s32.totalorder %s65, %s68
      %p77 = scmp.eq.s32.totalorder %s18, 3
      %p78 = por %p76, %p77
      %p79 = scmp.ne.s32.totalorder %s68, %s69
      %p80 = scmp.eq.s32.totalorder %s18, 0
      %p81 = por %p79, %p80
      %p82 = scmp.ne.s32.totalorder %s68, %s69
      %p83 = scmp.eq.s32.totalorder %s19, 3
      %p84 = por %p82, %p83
      %p86 = scmp.ne.s32.totalorder %s69, %s85
      %p87 = scmp.eq.s32.totalorder %s19, 0
      %p88 = por %p86, %p87
      %p89 = scmp.le.s32.totalorder 1, %s13
      %p90 = scmp.lt.s32.totalorder %s13, 5
      %p91 = pnand %p89, %p90
      %p92 = pneg %p91
      // Predicated region
      $region9: #{tpu_custom_call.1} parent=5 // pred_check
        _
      $region10: #{tpu_custom_call.1} parent=5 // pred_check_branch
        %94 = sbr.rel (%p91) target = $region12
      $region11: #{tpu_custom_call.1} parent=5 // pred_region
        %s95 = ssub.s32 %s13, 1
      $region12: #{tpu_custom_call.1} parent=5 // pred_fallthru
        _
      %p96 = scmp.lt.s32.totalorder %s13, 4
      // Predicated region
      $region13: #{tpu_custom_call.1} parent=5 // pred_check
        %p97 = pneg %p96
      $region14: #{tpu_custom_call.1} parent=5 // pred_check_branch
        %99 = sbr.rel (%p97) target = $region16
      $region15: #{tpu_custom_call.1} parent=5 // pred_region
        // Predicated region
        $region17: #{tpu_custom_call.1} parent=15 // pred_check
          %p100 = pneg %p47
        $region18: #{tpu_custom_call.1} parent=15 // pred_check_branch
          %102 = sbr.rel (%p100) target = $region20
        $region19: #{tpu_custom_call.1} parent=15 // pred_region
          %s103 = sand.u32 %s37, 1
          %s104 = scalar_lea.sflag [#allocation3], %s103
          %s105 = sand.u32 %s37, 1
          %s106 = smul.addr %s105, 128
          %s107 = scalar_lea.vmem [#allocation2], %s106
          %s108 = smul.u32 8, %s21
          %s110 = ssub.s32 2048, 2048
          %111 = vsyncadd %s104, %s110
          %s112 = smul.addr %s108, 2
          %s113 = smul.addr %s20, 32
          %s114 = sadd.s32 %s112, %s113
          %s115 = smul.addr %s114, 128
          %s116 = scalar_lea.hbm %s0, %s115
          %s117 = sshll.u32 %s107, 4
          %s118 = int_to_ptr.vmem [resolvable:$true] %s117
          %123 = dma.hbm_to_vmem [thread:$0]  %s116, 2048, %s118, %s104, 128, 128, 8
        $region20: #{tpu_custom_call.1} parent=15 // pred_fallthru
          _
      $region16: #{tpu_custom_call.1} parent=5 // pred_fallthru
        _
      %p124 = scmp.le.s32.totalorder 1, %s13
      %p125 = scmp.lt.s32.totalorder %s13, 5
      %p126 = pnand %p124, %p125
      %p127 = pneg %p126
      // Predicated region
      $region21: #{tpu_custom_call.1} parent=5 // pred_check
        _
      $region22: #{tpu_custom_call.1} parent=5 // pred_check_branch
        %129 = sbr.rel (%p126) target = $region24
      $region23: #{tpu_custom_call.1} parent=5 // pred_region
        %s130 = ssub.s32 %s13, 1
        %s131 = sand.u32 %s40, 1
        %s132 = scalar_lea.sflag [#allocation3], %s131
        %s133 = sand.u32 %s40, 1
        %s134 = smul.addr %s133, 128
        %s135 = scalar_lea.vmem [#allocation2], %s134
        // Predicated region
        $region25: #{tpu_custom_call.1} parent=23 // pred_check
          %p136 = pneg %p53
        $region26: #{tpu_custom_call.1} parent=23 // pred_check_branch
          %138 = sbr.rel (%p136) target = $region28
        $region27: #{tpu_custom_call.1} parent=23 // pred_region
          %139 = dma.done %s132, 2048
        $region28: #{tpu_custom_call.1} parent=23 // pred_fallthru
          _
        %s140 = sand.u32 %s40, 1
        %s141 = scalar_lea.sflag [#allocation3], %s140
        %s142 = sand.u32 %s40, 1
        %s143 = smul.addr %s142, 128
        %s144 = scalar_lea.vmem [#allocation2], %s143
        %p145 = pneg %p53
        %p146 = pneg %p50
        %p147 = pneg %p81
        %p148 = pneg %p78
        %s149 = sand.u32 %s68, 1
        %s150 = scalar_lea.sflag [#allocation4], %s149
        %s151 = sand.u32 %s68, 1
        %s152 = smul.addr %s151, 2
        %s153 = scalar_lea.vmem [#allocation5], %s152
        %s154 = smul.u32 8, %s23
        %v155 = vld [vmem:[%s135] sm:$0xff]
        %v156 = vld [vmem:[%s135 + $0x8] sm:$0xff]
        %v157 = vld [vmem:[%s135 + $0x10] sm:$0xff]
        %v158 = vld [vmem:[%s135 + $0x18] sm:$0xff]
        %v159 = vld [vmem:[%s135 + $0x20] sm:$0xff]
        %v160 = vld [vmem:[%s135 + $0x28] sm:$0xff]
        %v161 = vld [vmem:[%s135 + $0x30] sm:$0xff]
        %v162 = vld [vmem:[%s135 + $0x38] sm:$0xff]
        %v163 = vld [vmem:[%s135 + $0x40] sm:$0xff]
        %v164 = vld [vmem:[%s135 + $0x48] sm:$0xff]
        %v165 = vld [vmem:[%s135 + $0x50] sm:$0xff]
        %v166 = vld [vmem:[%s135 + $0x58] sm:$0xff]
        %v167 = vld [vmem:[%s135 + $0x60] sm:$0xff]
        %v168 = vld [vmem:[%s135 + $0x68] sm:$0xff]
        %v169 = vld [vmem:[%s135 + $0x70] sm:$0xff]
        %v170 = vld [vmem:[%s135 + $0x78] sm:$0xff]
        %vm171 = vcmask 261120
        %v172 = vsel %vm171, %v155, 0.0
        %v173 = vsel %vm171, %v156, 0.0
        %v174 = vadd.f32 %v172, %v173
        %v175 = vsel %vm171, %v157, 0.0
        %v176 = vadd.f32 %v174, %v175
        %v177 = vsel %vm171, %v158, 0.0
        %v178 = vadd.f32 %v176, %v177
        %v179 = vsel %vm171, %v159, 0.0
        %v180 = vadd.f32 %v178, %v179
        %v181 = vsel %vm171, %v160, 0.0
        %v182 = vadd.f32 %v180, %v181
        %v183 = vsel %vm171, %v161, 0.0
        %v184 = vadd.f32 %v182, %v183
        %v185 = vsel %vm171, %v162, 0.0
        %v186 = vadd.f32 %v184, %v185
        %v187 = vsel %vm171, %v163, 0.0
        %v188 = vadd.f32 %v186, %v187
        %v189 = vsel %vm171, %v164, 0.0
        %v190 = vadd.f32 %v188, %v189
        %v191 = vsel %vm171, %v165, 0.0
        %v192 = vadd.f32 %v190, %v191
        %v193 = vsel %vm171, %v166, 0.0
        %v194 = vadd.f32 %v192, %v193
        %v195 = vsel %vm171, %v167, 0.0
        %v196 = vadd.f32 %v194, %v195
        %v197 = vsel %vm171, %v168, 0.0
        %v198 = vadd.f32 %v196, %v197
        %v199 = vsel %vm171, %v169, 0.0
        %v200 = vadd.f32 %v198, %v199
        %v201 = vsel %vm171, %v170, 0.0
        %v202 = vadd.f32 %v200, %v201
        %v203 = vrot.slane %v202, 4
        %v204 = vadd.f32 %v202, %v203
        %v205 = vrot.slane %v204, 2
        %v206 = vadd.f32 %v204, %v205
        %v207 = vrot.slane %v206, 1
        %v208 = vadd.f32 %v206, %v207
        %v209 = vmul.f32 %v155, %v155
        %v210 = vmul.f32 %v156, %v156
        %v211 = vmul.f32 %v157, %v157
        %v212 = vmul.f32 %v158, %v158
        %v213 = vmul.f32 %v159, %v159
        %v214 = vmul.f32 %v160, %v160
        %v215 = vmul.f32 %v161, %v161
        %v216 = vmul.f32 %v162, %v162
        %v217 = vmul.f32 %v163, %v163
        %v218 = vmul.f32 %v164, %v164
        %v219 = vmul.f32 %v165, %v165
        %v220 = vmul.f32 %v166, %v166
        %v221 = vmul.f32 %v167, %v167
        %v222 = vmul.f32 %v168, %v168
        %v223 = vmul.f32 %v169, %v169
        %v224 = vmul.f32 %v170, %v170
        %v225 = vsel %vm171, %v209, 0.0
        %v226 = vsel %vm171, %v210, 0.0
        %v227 = vadd.f32 %v225, %v226
        %v228 = vsel %vm171, %v211, 0.0
        %v229 = vadd.f32 %v227, %v228
        %v230 = vsel %vm171, %v212, 0.0
        %v231 = vadd.f32 %v229, %v230
        %v232 = vsel %vm171, %v213, 0.0
        %v233 = vadd.f32 %v231, %v232
        %v234 = vsel %vm171, %v214, 0.0
        %v235 = vadd.f32 %v233, %v234
        %v236 = vsel %vm171, %v215, 0.0
        %v237 = vadd.f32 %v235, %v236
        %v238 = vsel %vm171, %v216, 0.0
        %v239 = vadd.f32 %v237, %v238
        %v240 = vsel %vm171, %v217, 0.0
        %v241 = vadd.f32 %v239, %v240
        %v242 = vsel %vm171, %v218, 0.0
        %v243 = vadd.f32 %v241, %v242
        %v244 = vsel %vm171, %v219, 0.0
        %v245 = vadd.f32 %v243, %v244
        %v246 = vsel %vm171, %v220, 0.0
        %v247 = vadd.f32 %v245, %v246
        %v248 = vsel %vm171, %v221, 0.0
        %v249 = vadd.f32 %v247, %v248
        %v250 = vsel %vm171, %v222, 0.0
        %v251 = vadd.f32 %v249, %v250
        %v252 = vsel %vm171, %v223, 0.0
        %v253 = vadd.f32 %v251, %v252
        %v254 = vsel %vm171, %v224, 0.0
        %v255 = vadd.f32 %v253, %v254
        %v256 = vrot.slane %v255, 4
        %v257 = vadd.f32 %v255, %v256
        %v258 = vrot.slane %v257, 2
        %v259 = vadd.f32 %v257, %v258
        %v260 = vrot.slane %v259, 1
        %v261 = vadd.f32 %v259, %v260
        %vm262 = vcmask 1040384
        %v263 = vsel %vm262, %v208, %v261
        %vm264 = vcmask 254976
        %265 = vst.msk [vmem:[%s153] sm:$0x3] %vm264, %v263
        %s266 = sand.u32 %s68, 1
        %s267 = scalar_lea.sflag [#allocation4], %s266
        %s268 = sand.u32 %s68, 1
        %s269 = smul.addr %s268, 2
        %s270 = scalar_lea.vmem [#allocation5], %s269
        // Predicated region
        $region29: #{tpu_custom_call.1} parent=23 // pred_check
          %p271 = pneg %p78
        $region30: #{tpu_custom_call.1} parent=23 // pred_check_branch
          %273 = sbr.rel (%p271) target = $region32
        $region31: #{tpu_custom_call.1} parent=23 // pred_region
          %s275 = ssub.s32 32, 32
          %276 = vsyncadd %s267, %s275
          %s277 = smul.addr %s22, 2
          %s278 = sadd.s32 %s23, %s277
          %s279 = smul.addr %s278, 32
          %s280 = scalar_lea.hbm %s1, %s279
          %s282 = sshll.u32 %s270, 4
          %s283 = int_to_ptr.vmem [resolvable:$true] %s282
          %285 = dma.vmem_to_hbm [thread:$0]  %s283, 32, %s280, %s267
        $region32: #{tpu_custom_call.1} parent=23 // pred_fallthru
          _
      $region24: #{tpu_custom_call.1} parent=5 // pred_fallthru
        _
      %p286 = scmp.le.s32.totalorder 2, %s13
      // Predicated region
      $region33: #{tpu_custom_call.1} parent=5 // pred_check
        %p287 = pneg %p286
      $region34: #{tpu_custom_call.1} parent=5 // pred_check_branch
        %289 = sbr.rel (%p287) target = $region36
      $region35: #{tpu_custom_call.1} parent=5 // pred_region
        %s290 = ssub.s32 %s13, 2
        // Predicated region
        $region37: #{tpu_custom_call.1} parent=35 // pred_check
          %p291 = pneg %p84
        $region38: #{tpu_custom_call.1} parent=35 // pred_check_branch
          %293 = sbr.rel (%p291) target = $region40
        $region39: #{tpu_custom_call.1} parent=35 // pred_region
          %s294 = sand.u32 %s69, 1
          %s295 = scalar_lea.sflag [#allocation4], %s294
          %s296 = sand.u32 %s69, 1
          %s297 = smul.addr %s296, 2
          %s298 = scalar_lea.vmem [#allocation5], %s297
          %299 = dma.done %s295, 32
        $region40: #{tpu_custom_call.1} parent=35 // pred_fallthru
          _
      $region36: #{tpu_custom_call.1} parent=5 // pred_fallthru
        _
    $region6: #{tpu_custom_call.1} parent=1 // loop_footer
      %s17 = sadd.s32 1, %s13
    $region7: #{tpu_custom_call.1} parent=1 // loop_footer_branch
      %12 = sbr.rel target = $region3
    $region8: #{tpu_custom_call.1} parent=1 // loop_exit
      _
    %300 = vsyncpa [#allocation3], 1
    %s301 = scalar_lea.sflag [#allocation3], 1
    %302 = vsyncpa %s301, 1
    %303 = vsyncpa [#allocation4], 1
    %s304 = scalar_lea.sflag [#allocation4], 1
    %305 = vsyncpa %s304, 1

</llo_original>
